<compile_context>
chip_gen: v7x
topology: tpu7x:2x2x1
jax: 0.10.0
libtpu: 0.0.40
codegen_flags: <defaults>
</compile_context>

<pallas_src>
import jax
import jax.numpy as jnp
from jax.experimental import pallas as pl
from jax.experimental.pallas import tpu as pltpu


def _pa_kernel(x_ref, w1_ref, b1_ref, w2_ref, b2_ref, o_ref):
    # x_ref: (C, TP) — channels on sublanes, pixels on lanes (one image tile).
    x = x_ref[...]
    # 1x1 conv #1 (+bias, ReLU): (Cr, C) @ (C, TP) -> (Cr, TP), f32 accumulate.
    h = jnp.dot(w1_ref[...], x, preferred_element_type=jnp.float32) + b1_ref[...]
    h = jnp.maximum(h, 0.0)
    # 1x1 conv #2 (Cr -> 1) as VPU multiply + sublane (XLU) reduce — avoids the
    # degenerate K=Cr, N=1 MXU matmul and the awkward (TP, 1) layout.
    y = jnp.sum(h * w2_ref[...], axis=0, keepdims=True) + b2_ref[...]   # (1, TP)
    y = jax.nn.sigmoid(y)
    # Gate in the input dtype (cast y down, not x up) -> lane-dense store.
    o_ref[...] = (x * y.astype(x.dtype)).astype(o_ref.dtype)


def pa_layer(x_nchw, w1, b1, w2, b2, *, target_tile_bytes=2 << 20):
    """PALayer forward.

    x_nchw: (N, C, H, W); w1: (C//8, C); b1: (C//8,); w2: (1, C//8); b2: (1,).
    """
    N, C, H, W = x_nchw.shape
    Cr = w1.shape[0]          # C // 8
    P = H * W
    itemsize = jnp.dtype(x_nchw.dtype).itemsize

    # Free reshape: pixels land on the lane axis.
    x_pix = x_nchw.reshape(N, C, P)

    # ---- pixel-tile selection (lane axis), no padding ever -----------------
    if P <= 128:
        tp = P                                   # full-extent block (== array dim)
    else:
        # VMEM-driven cap; >= 512 lanes so each of the C strided DMA rows is
        # >= 2 KiB contiguous; multiple of 128 for lane-dense stores.
        lane_budget = max(512, (target_tile_bytes // max(1, C * itemsize)) // 128 * 128)
        n_tiles = pl.cdiv(P, lane_budget)
        if N == 1:
            n_tiles = max(n_tiles, 2)            # >= 2 grid steps for v7x megacore
        if n_tiles == 1:
            tp = P                               # single full-extent block, no masking
        else:
            # Near-divisor tile: the ragged last block is mostly real pixels.
            tp = pl.cdiv(pl.cdiv(P, n_tiles), 128) * 128
    n_p = pl.cdiv(P, tp)

    # Parameter layouts for channels-on-sublane math.
    w1_m = w1.astype(x_nchw.dtype)                   # (Cr, C)  — MXU operand dtype
    b1_m = b1.astype(jnp.float32).reshape(Cr, 1)     # (Cr, 1)
    w2_m = w2.astype(jnp.float32).reshape(Cr, 1)     # (Cr, 1)
    b2_m = b2.astype(jnp.float32).reshape(1, 1)      # (1, 1)

    # VMEM budget: double-buffered in/out tiles + f32 intermediates + headroom.
    tile_bytes = C * tp * itemsize
    f32_tmp = (2 * Cr + 1) * tp * 4 + C * tp * 4     # h, h*w2, y, + full-tile slack
    vmem_limit = int(min(max(4 * tile_bytes + f32_tmp + (4 << 20), 32 << 20), 56 << 20))

    out = pl.pallas_call(
        _pa_kernel,
        out_shape=jax.ShapeDtypeStruct((N, C, P), x_nchw.dtype),
        grid_spec=pltpu.PrefetchScalarGridSpec(
            num_scalar_prefetch=0,
            grid=(N, n_p),
            in_specs=[
                pl.BlockSpec((None, C, tp), lambda n, p: (n, 0, p)),  # x tile
                pl.BlockSpec((Cr, C), lambda n, p: (0, 0)),           # w1
                pl.BlockSpec((Cr, 1), lambda n, p: (0, 0)),           # b1
                pl.BlockSpec((Cr, 1), lambda n, p: (0, 0)),           # w2
                pl.BlockSpec((1, 1), lambda n, p: (0, 0)),            # b2
            ],
            out_specs=pl.BlockSpec((None, C, tp), lambda n, p: (n, 0, p)),
        ),
        compiler_params=pltpu.CompilerParams(
            dimension_semantics=("parallel", "parallel"),
            vmem_limit_bytes=vmem_limit,
        ),
    )(x_pix, w1_m, b1_m, w2_m, b2_m)

    return out.reshape(N, C, H, W)


def pa_layer_ref(x_nchw, w1, b1, w2, b2):
    """Pure-JAX reference mirroring the PyTorch module (f32, highest precision)."""
    hi = jax.lax.Precision.HIGHEST
    h = jnp.einsum("nchw,oc->nohw", x_nchw, w1, precision=hi) + b1[None, :, None, None]
    h = jnp.maximum(h, 0.0)
    y = jnp.einsum("nchw,oc->nohw", h, w2, precision=hi) + b2[None, :, None, None]
    y = jax.nn.sigmoid(y)                                   # (N,1,H,W)
    return x_nchw * y


if __name__ == "__main__":
    key = jax.random.PRNGKey(0)
    N, C, H, W = 2, 32, 16, 16   # channel must be >= 8 (uses channel // 8)
    Cr = C // 8

    k_x, k_w1, k_b1, k_w2, k_b2 = jax.random.split(key, 5)
    x = jax.random.normal(k_x, (N, C, H, W), dtype=jnp.float32)
    # Parameters with nn.Conv2d(C, C//8, 1) / nn.Conv2d(C//8, 1, 1) shapes.
    w1 = jax.random.normal(k_w1, (Cr, C), dtype=jnp.float32) * 0.1   # (out, in)
    b1 = jax.random.normal(k_b1, (Cr,), dtype=jnp.float32) * 0.1
    w2 = jax.random.normal(k_w2, (1, Cr), dtype=jnp.float32) * 0.1
    b2 = jax.random.normal(k_b2, (1,), dtype=jnp.float32) * 0.1

    out = jax.block_until_ready(pa_layer(x, w1, b1, w2, b2))
    ref = jax.block_until_ready(pa_layer_ref(x, w1, b1, w2, b2))

    assert out.shape == x.shape and out.dtype == x.dtype
    assert jnp.allclose(out, ref, atol=1e-4, rtol=1e-4), "mismatch vs reference"
    print("KERNEL_OK")
</pallas_src>

<mosaic_0001>
module attributes {stable_mosaic.version = 11 : i64} {
  func.func @_pa_kernel(%arg0: i32, %arg1: i32, %arg2: memref<1x32x256xf32, #tpu.memory_space<vmem>>, %arg3: memref<4x32xf32, #tpu.memory_space<vmem>>, %arg4: memref<4x1xf32, #tpu.memory_space<vmem>>, %arg5: memref<4x1xf32, #tpu.memory_space<vmem>>, %arg6: memref<1x1xf32, #tpu.memory_space<vmem>>, %arg7: memref<1x32x256xf32, #tpu.memory_space<vmem>>) attributes {dimension_semantics = [#tpu.dimension_semantics<parallel>, #tpu.dimension_semantics<parallel>], iteration_bounds = array<i64: 2, 1>, scalar_prefetch = 0 : i64, scratch_operands = 0 : i64, tpu.core_type = #tpu.core_type<tc>, window_params = [{transform_indices = @transform_0, window_bounds = array<i64: 1, 32, 256>}, {pipeline_mode = #tpu.pipeline_mode<synchronous>, transform_indices = @transform_1, window_bounds = array<i64: 4, 32>}, {pipeline_mode = #tpu.pipeline_mode<synchronous>, transform_indices = @transform_2, window_bounds = array<i64: 4, 1>}, {pipeline_mode = #tpu.pipeline_mode<synchronous>, transform_indices = @transform_3, window_bounds = array<i64: 4, 1>}, {pipeline_mode = #tpu.pipeline_mode<synchronous>, transform_indices = @transform_4, window_bounds = array<i64: 1, 1>}, {transform_indices = @transform_5, window_bounds = array<i64: 1, 32, 256>}]} {
    %c0 = arith.constant 0 : index
    %c0_0 = arith.constant 0 : index
    %c0_1 = arith.constant 0 : index
    %0 = vector.load %arg2[%c0, %c0_0, %c0_1] : memref<1x32x256xf32, #tpu.memory_space<vmem>>, vector<1x32x256xf32>
    %1 = vector.shape_cast %0 : vector<1x32x256xf32> to vector<32x256xf32>
    %c0_2 = arith.constant 0 : index
    %c0_3 = arith.constant 0 : index
    %2 = vector.load %arg3[%c0_2, %c0_3] : memref<4x32xf32, #tpu.memory_space<vmem>>, vector<4x32xf32>
    %cst = arith.constant dense<0.000000e+00> : vector<4x256xf32>
    %3 = tpu.matmul %2, %1, %cst {dimension_numbers = #tpu.dot_dimension_numbers<[1], [0], [0], [1], [0, 0, 1, 1], [], []>} : vector<4x32xf32>, vector<32x256xf32>, vector<4x256xf32> -> vector<4x256xf32>
    %c0_4 = arith.constant 0 : index
    %c0_5 = arith.constant 0 : index
    %4 = vector.load %arg4[%c0_4, %c0_5] : memref<4x1xf32, #tpu.memory_space<vmem>>, vector<4x1xf32>
    %5 = vector.broadcast %4 : vector<4x1xf32> to vector<4x256xf32>
    %6 = arith.addf %3, %5 : vector<4x256xf32>
    %cst_6 = arith.constant 0.000000e+00 : f32
    %7 = vector.broadcast %cst_6 : f32 to vector<4x256xf32>
    %8 = arith.maximumf %6, %7 : vector<4x256xf32>
    %c0_7 = arith.constant 0 : index
    %c0_8 = arith.constant 0 : index
    %9 = vector.load %arg5[%c0_7, %c0_8] : memref<4x1xf32, #tpu.memory_space<vmem>>, vector<4x1xf32>
    %10 = vector.broadcast %9 : vector<4x1xf32> to vector<4x256xf32>
    %11 = arith.mulf %8, %10 : vector<4x256xf32>
    %cst_9 = arith.constant dense<0.000000e+00> : vector<256xf32>
    %12 = vector.multi_reduction <add>, %11, %cst_9 [0] : vector<4x256xf32> to vector<256xf32>
    %13 = vector.shape_cast %12 : vector<256xf32> to vector<1x256xf32>
    %c0_10 = arith.constant 0 : index
    %c0_11 = arith.constant 0 : index
    %14 = vector.load %arg6[%c0_10, %c0_11] : memref<1x1xf32, #tpu.memory_space<vmem>>, vector<1x1xf32>
    %15 = vector.broadcast %14 : vector<1x1xf32> to vector<1x256xf32>
    %16 = arith.addf %13, %15 : vector<1x256xf32>
    %17 = arith.negf %16 : vector<1x256xf32>
    %18 = math.exp %17 : vector<1x256xf32>
    %cst_12 = arith.constant 1.000000e+00 : f32
    %19 = vector.broadcast %cst_12 : f32 to vector<1x256xf32>
    %20 = arith.addf %19, %18 : vector<1x256xf32>
    %21 = arith.divf %19, %20 : vector<1x256xf32>
    %22 = vector.broadcast %21 : vector<1x256xf32> to vector<32x256xf32>
    %23 = arith.mulf %1, %22 : vector<32x256xf32>
    %c0_13 = arith.constant 0 : index
    %c0_14 = arith.constant 0 : index
    %c0_15 = arith.constant 0 : index
    %24 = vector.load %arg7[%c0_13, %c0_14, %c0_15] : memref<1x32x256xf32, #tpu.memory_space<vmem>>, vector<1x32x256xf32>
    %25 = vector.shape_cast %24 : vector<1x32x256xf32> to vector<32x256xf32>
    %26 = vector.shape_cast %23 : vector<32x256xf32> to vector<1x32x256xf32>
    tpu.vector_store %arg7[%c0_13, %c0_14, %c0_15], %26 {strides = array<i32>} : memref<1x32x256xf32, #tpu.memory_space<vmem>>, vector<1x32x256xf32>,
    return
  }
  func.func @transform_0(%arg0: i32, %arg1: i32) -> (i32, i32, i32) {
    %c0_i32 = arith.constant 0 : i32
    %c0_i32_0 = arith.constant 0 : i32
    return %arg0, %c0_i32, %arg1 : i32, i32, i32
  }
  func.func @transform_1(%arg0: i32, %arg1: i32) -> (i32, i32) {
    %c0_i32 = arith.constant 0 : i32
    %c0_i32_0 = arith.constant 0 : i32
    %c0_i32_1 = arith.constant 0 : i32
    return %c0_i32, %c0_i32_0 : i32, i32
  }
  func.func @transform_2(%arg0: i32, %arg1: i32) -> (i32, i32) {
    %c0_i32 = arith.constant 0 : i32
    %c0_i32_0 = arith.constant 0 : i32
    %c0_i32_1 = arith.constant 0 : i32
    return %c0_i32, %c0_i32_0 : i32, i32
  }
  func.func @transform_3(%arg0: i32, %arg1: i32) -> (i32, i32) {
    %c0_i32 = arith.constant 0 : i32
    %c0_i32_0 = arith.constant 0 : i32
    %c0_i32_1 = arith.constant 0 : i32
    return %c0_i32, %c0_i32_0 : i32, i32
  }
  func.func @transform_4(%arg0: i32, %arg1: i32) -> (i32, i32) {
    %c0_i32 = arith.constant 0 : i32
    %c0_i32_0 = arith.constant 0 : i32
    %c0_i32_1 = arith.constant 0 : i32
    return %c0_i32, %c0_i32_0 : i32, i32
  }
  func.func @transform_5(%arg0: i32, %arg1: i32) -> (i32, i32, i32) {
    %c0_i32 = arith.constant 0 : i32
    %c0_i32_0 = arith.constant 0 : i32
    return %arg0, %c0_i32, %arg1 : i32, i32, i32
  }
}

</mosaic_0001>

<llo_original>
// kernel: tpu_custom_call.1
$region0: #{tpu_custom_call.1}
  #allocation0 [shape = 'u32[]', space=smem, size = 0x4, offset = 0x4, fixed_abs, tag = 'smem constant byte address 0x4 - core index']
  #allocation1 [shape = 'u32[144,128]{1,0:T(1,128)}', space=vmem, size = 0x12000, scoped, tag = 'internal scratch']
  #allocation2 [shape = 'f32[1,1]{1,0:T(1,128)S(1)}', space=vmem, size = 0x200, scoped, tag = 'scoped memory for tpu_custom_call.1']
  %s0 = inlined_call_operand.hbm [shape: f32[2,32,256], index: 0, kind: input, shape index: {}]
  %s1 = inlined_call_operand.vmem [shape: f32[4,32], index: 1, kind: input, shape index: {}]
  %s2 = inlined_call_operand.vmem [shape: f32[4,1], index: 2, kind: input, shape index: {}]
  %s3 = inlined_call_operand.vmem [shape: f32[4,1], index: 3, kind: input, shape index: {}]
  %s4 = inlined_call_operand.<no memory space> [shape: f32[1,1], index: 4, kind: input, shape index: {}]
  %s5 = inlined_call_operand.hbm [shape: f32[2,32,256], index: 5, kind: output, shape index: {}]
  %s6 = sld [smem:[#allocation0]]
  $region57: #{tpu_custom_call.1} parent=0
    _
  %s8 = ssub.s32 1, %s6
  %s9 = scalar_select 0, %s8, %s6
  %v10 = vstv %s4
  %11 = vst [vmem:[#allocation2] sm:$0x1] %v10
  $region1: #{tpu_custom_call.1} parent=0
    #allocation3 [shape = 'u8[65536]{0}', space=vmem, size = 0x10000, scoped, tag = 'input window, operand 0']
    #allocation4 [shape = 's32[2]{0}', space=sflag, size = 0x8, scoped, tag = 'scoped memory for tpu_custom_call.1']
    #allocation5 [shape = 's32[2]{0}', space=sflag, size = 0x8, scoped, tag = 'scoped memory for tpu_custom_call.1']
    #allocation6 [shape = 'u8[65536]{0}', space=vmem, size = 0x10000, scoped, tag = 'output window, operand 0']
    %12 = vsyncpa [#allocation4], 0
    %s13 = scalar_lea.sflag [#allocation4], 1
    %14 = vsyncpa %s13, 0
    %15 = vsyncpa [#allocation5], 0
    %s16 = scalar_lea.sflag [#allocation5], 1
    %17 = vsyncpa %s16, 0
    loop: start=0, step=1, limit=4
    $region2: #{tpu_custom_call.1} parent=1 // loop_pre_header
      _
    $region3: #{tpu_custom_call.1} parent=1 // loop_header
      %s19 = sphi 0, %s23
      %p20 = scmp.ge.s32.totalorder %s19, 4
      %s26 = sphi 0, %s38
      %s27 = sphi 0, %s34
      %s28 = sphi 0, %s26
      %s29 = sphi 0, %s27
      %s30 = sphi 0, %s28
      %s31 = sphi 0, %s29
      %s43 = sphi 0, %s45
      %s46 = sphi 0, %s43
      %s47 = sphi 0, %s46
      %s63 = sphi 0, %s47
      %s67 = sphi 0, %s67
      %s69 = sphi 0, %s67
      %s70 = sphi 0, %s69
      %s84 = sphi 0, %s70
      %s88 = sphi 0, %s88
      %s90 = sphi 0, %s88
      %s91 = sphi 0, %s90
      %s105 = sphi 0, %s91
      %s109 = sphi 0, %s109
      %s111 = sphi 0, %s109
      %s112 = sphi 0, %s111
      %s126 = sphi 0, %s112
      %s130 = sphi 0, %s130
      %s132 = sphi 0, %s130
      %s133 = sphi 0, %s132
      %s147 = sphi 0, %s133
      %s155 = sphi 0, %s157
      %s158 = sphi 0, %s155
      %s159 = sphi 0, %s158
      %s175 = sphi 0, %s159
    $region4: #{tpu_custom_call.1} parent=1 // loop_header_branch
      %22 = sbr.rel (%p20) target = $region8
    $region5: #{tpu_custom_call.1} parent=1 // loop_body
      %s24 = ssub.s32 %s19, 1
      %s25 = ssub.s32 %s19, 2
      %s32 = sadd.s32 1, %s27
      %p33 = scmp.ge.s32.totalorder %s32, 1
      %s34 = scalar_select %p33, 0, %s32
      %s35 = sadd.s32 1, %s26
      %s36 = scalar_select %p33, %s35, %s26
      %p37 = scmp.ge.s32.totalorder %s36, 2
      %s38 = scalar_select %p37, 0, %s36
      %s39 = ssub.s32 %s26, %s38
      %s40 = ssub.s32 %s27, %s34
      %s41 = sor.u32 %s39, %s40
      %p42 = scmp.eq.s32.totalorder %s41, 0
      %s44 = sadd.s32 %s43, 1
      %s45 = scalar_select %p42, %s43, %s44
      %p48 = pneg %p42
      %p49 = scmp.eq.s32.totalorder %s19, 1
      %p50 = por %p48, %p49
      %p51 = scmp.ne.s32.totalorder %s43, %s46
      %p52 = scmp.eq.s32.totalorder %s19, 0
      %p53 = por %p51, %p52
      %p54 = scmp.ne.s32.totalorder %s43, %s46
      %p55 = scmp.eq.s32.totalorder %s24, 1
      %p56 = por %p54, %p55
      %p57 = scmp.ne.s32.totalorder %s46, %s47
      %p58 = scmp.eq.s32.totalorder %s24, 0
      %p59 = por %p57, %p58
      %p60 = scmp.ne.s32.totalorder %s46, %s47
      %p61 = scmp.eq.s32.totalorder %s25, 1
      %p62 = por %p60, %p61
      %p64 = scmp.ne.s32.totalorder %s47, %s63
      %p65 = scmp.eq.s32.totalorder %s25, 0
      %p66 = por %p64, %p65
      %s68 = sadd.s32 %s67, 1
      %p71 = scmp.eq.s32.totalorder %s19, 1
      %p72 = scmp.ne.s32.totalorder %s67, %s69
      %p73 = scmp.eq.s32.totalorder %s19, 0
      %p74 = por %p72, %p73
      %p75 = scmp.ne.s32.totalorder %s67, %s69
      %p76 = scmp.eq.s32.totalorder %s24, 1
      %p77 = por %p75, %p76
      %p78 = scmp.ne.s32.totalorder %s69, %s70
      %p79 = scmp.eq.s32.totalorder %s24, 0
      %p80 = por %p78, %p79
      %p81 = scmp.ne.s32.totalorder %s69, %s70
      %p82 = scmp.eq.s32.totalorder %s25, 1
      %p83 = por %p81, %p82
      %p85 = scmp.ne.s32.totalorder %s70, %s84
      %p86 = scmp.eq.s32.totalorder %s25, 0
      %p87 = por %p85, %p86
      %s89 = sadd.s32 %s88, 1
      %p92 = scmp.eq.s32.totalorder %s19, 1
      %p93 = scmp.ne.s32.totalorder %s88, %s90
      %p94 = scmp.eq.s32.totalorder %s19, 0
      %p95 = por %p93, %p94
      %p96 = scmp.ne.s32.totalorder %s88, %s90
      %p97 = scmp.eq.s32.totalorder %s24, 1
      %p98 = por %p96, %p97
      %p99 = scmp.ne.s32.totalorder %s90, %s91
      %p100 = scmp.eq.s32.totalorder %s24, 0
      %p101 = por %p99, %p100
      %p102 = scmp.ne.s32.totalorder %s90, %s91
      %p103 = scmp.eq.s32.totalorder %s25, 1
      %p104 = por %p102, %p103
      %p106 = scmp.ne.s32.totalorder %s91, %s105
      %p107 = scmp.eq.s32.totalorder %s25, 0
      %p108 = por %p106, %p107
      %s110 = sadd.s32 %s109, 1
      %p113 = scmp.eq.s32.totalorder %s19, 1
      %p114 = scmp.ne.s32.totalorder %s109, %s111
      %p115 = scmp.eq.s32.totalorder %s19, 0
      %p116 = por %p114, %p115
      %p117 = scmp.ne.s32.totalorder %s109, %s111
      %p118 = scmp.eq.s32.totalorder %s24, 1
      %p119 = por %p117, %p118
      %p120 = scmp.ne.s32.totalorder %s111, %s112
      %p121 = scmp.eq.s32.totalorder %s24, 0
      %p122 = por %p120, %p121
      %p123 = scmp.ne.s32.totalorder %s111, %s112
      %p124 = scmp.eq.s32.totalorder %s25, 1
      %p125 = por %p123, %p124
      %p127 = scmp.ne.s32.totalorder %s112, %s126
      %p128 = scmp.eq.s32.totalorder %s25, 0
      %p129 = por %p127, %p128
      %s131 = sadd.s32 %s130, 1
      %p134 = scmp.eq.s32.totalorder %s19, 1
      %p135 = scmp.ne.s32.totalorder %s130, %s132
      %p136 = scmp.eq.s32.totalorder %s19, 0
      %p137 = por %p135, %p136
      %p138 = scmp.ne.s32.totalorder %s130, %s132
      %p139 = scmp.eq.s32.totalorder %s24, 1
      %p140 = por %p138, %p139
      %p141 = scmp.ne.s32.totalorder %s132, %s133
      %p142 = scmp.eq.s32.totalorder %s24, 0
      %p143 = por %p141, %p142
      %p144 = scmp.ne.s32.totalorder %s132, %s133
      %p145 = scmp.eq.s32.totalorder %s25, 1
      %p146 = por %p144, %p145
      %p148 = scmp.ne.s32.totalorder %s133, %s147
      %p149 = scmp.eq.s32.totalorder %s25, 0
      %p150 = por %p148, %p149
      %s151 = ssub.s32 %s26, %s38
      %s152 = ssub.s32 %s27, %s34
      %s153 = sor.u32 %s151, %s152
      %p154 = scmp.eq.s32.totalorder %s153, 0
      %s156 = sadd.s32 %s155, 1
      %s157 = scalar_select %p154, %s155, %s156
      %p160 = pneg %p154
      %p161 = scmp.eq.s32.totalorder %s19, 1
      %p162 = por %p160, %p161
      %p163 = scmp.ne.s32.totalorder %s155, %s158
      %p164 = scmp.eq.s32.totalorder %s19, 0
      %p165 = por %p163, %p164
      %p166 = scmp.ne.s32.totalorder %s155, %s158
      %p167 = scmp.eq.s32.totalorder %s24, 1
      %p168 = por %p166, %p167
      %p169 = scmp.ne.s32.totalorder %s158, %s159
      %p170 = scmp.eq.s32.totalorder %s24, 0
      %p171 = por %p169, %p170
      %p172 = scmp.ne.s32.totalorder %s158, %s159
      %p173 = scmp.eq.s32.totalorder %s25, 1
      %p174 = por %p172, %p173
      %p176 = scmp.ne.s32.totalorder %s159, %s175
      %p177 = scmp.eq.s32.totalorder %s25, 0
      %p178 = por %p176, %p177
      %p179 = scmp.le.s32.totalorder 1, %s19
      %p180 = scmp.lt.s32.totalorder %s19, 3
      %p181 = pnand %p179, %p180
      %p182 = pneg %p181
      // Predicated region
      $region9: #{tpu_custom_call.1} parent=5 // pred_check
        _
      $region10: #{tpu_custom_call.1} parent=5 // pred_check_branch
        %184 = sbr.rel (%p181) target = $region12
      $region11: #{tpu_custom_call.1} parent=5 // pred_region
        %s185 = ssub.s32 %s19, 1
        // Predicated region
        $region13: #{tpu_custom_call.1} parent=11 // pred_check
          %p186 = pneg %p80
        $region14: #{tpu_custom_call.1} parent=11 // pred_check_branch
          %188 = sbr.rel (%p186) target = $region16
        $region15: #{tpu_custom_call.1} parent=11 // pred_region
          _
        $region16: #{tpu_custom_call.1} parent=11 // pred_fallthru
          _
        // Predicated region
        $region17: #{tpu_custom_call.1} parent=11 // pred_check
          %p189 = pneg %p101
        $region18: #{tpu_custom_call.1} parent=11 // pred_check_branch
          %191 = sbr.rel (%p189) target = $region20
        $region19: #{tpu_custom_call.1} parent=11 // pred_region
          _
        $region20: #{tpu_custom_call.1} parent=11 // pred_fallthru
          _
        // Predicated region
        $region21: #{tpu_custom_call.1} parent=11 // pred_check
          %p192 = pneg %p122
        $region22: #{tpu_custom_call.1} parent=11 // pred_check_branch
          %194 = sbr.rel (%p192) target = $region24
        $region23: #{tpu_custom_call.1} parent=11 // pred_region
          _
        $region24: #{tpu_custom_call.1} parent=11 // pred_fallthru
          _
        // Predicated region
        $region25: #{tpu_custom_call.1} parent=11 // pred_check
          %p195 = pneg %p143
        $region26: #{tpu_custom_call.1} parent=11 // pred_check_branch
          %197 = sbr.rel (%p195) target = $region28
        $region27: #{tpu_custom_call.1} parent=11 // pred_region
          _
        $region28: #{tpu_custom_call.1} parent=11 // pred_fallthru
          _
      $region12: #{tpu_custom_call.1} parent=5 // pred_fallthru
        _
      %p198 = scmp.lt.s32.totalorder %s19, 2
      // Predicated region
      $region29: #{tpu_custom_call.1} parent=5 // pred_check
        %p199 = pneg %p198
      $region30: #{tpu_custom_call.1} parent=5 // pred_check_branch
        %201 = sbr.rel (%p199) target = $region32
      $region31: #{tpu_custom_call.1} parent=5 // pred_region
        // Predicated region
        $region33: #{tpu_custom_call.1} parent=31 // pred_check
          %p202 = pneg %p53
        $region34: #{tpu_custom_call.1} parent=31 // pred_check_branch
          %204 = sbr.rel (%p202) target = $region36
        $region35: #{tpu_custom_call.1} parent=31 // pred_region
          %s205 = sand.u32 %s43, 1
          %s206 = scalar_lea.sflag [#allocation4], %s205
          %s207 = sand.u32 %s43, 1
          %s208 = smul.addr %s207, 64
          %s209 = scalar_lea.vmem [#allocation3], %s208
          %s210 = smul.u32 2, %s27
          %s212 = ssub.s32 1024, 1024
          %213 = vsyncadd %s206, %s212
          %s214 = smul.addr %s26, 8
          %s215 = sadd.s32 %s210, %s214
          %s216 = smul.addr %s215, 128
          %s217 = scalar_lea.hbm %s0, %s216
          %s218 = sshll.u32 %s209, 4
          %s219 = int_to_ptr.vmem [resolvable:$true] %s218
          %224 = dma.hbm_to_vmem [thread:$0]  %s217, 1024, %s219, %s206, 256, 256, 16
        $region36: #{tpu_custom_call.1} parent=31 // pred_fallthru
          _
      $region32: #{tpu_custom_call.1} parent=5 // pred_fallthru
        _
      %p225 = scmp.le.s32.totalorder 1, %s19
      %p226 = scmp.lt.s32.totalorder %s19, 3
      %p227 = pnand %p225, %p226
      %p228 = pneg %p227
      // Predicated region
      $region37: #{tpu_custom_call.1} parent=5 // pred_check
        _
      $region38: #{tpu_custom_call.1} parent=5 // pred_check_branch
        %230 = sbr.rel (%p227) target = $region40
      $region39: #{tpu_custom_call.1} parent=5 // pred_region
        %s231 = ssub.s32 %s19, 1
        %s232 = sand.u32 %s46, 1
        %s233 = scalar_lea.sflag [#allocation4], %s232
        %s234 = sand.u32 %s46, 1
        %s235 = smul.addr %s234, 64
        %s236 = scalar_lea.vmem [#allocation3], %s235
        // Predicated region
        $region41: #{tpu_custom_call.1} parent=39 // pred_check
          %p237 = pneg %p59
        $region42: #{tpu_custom_call.1} parent=39 // pred_check_branch
          %239 = sbr.rel (%p237) target = $region44
        $region43: #{tpu_custom_call.1} parent=39 // pred_region
          %240 = dma.done %s233, 1024
        $region44: #{tpu_custom_call.1} parent=39 // pred_fallthru
          _
        %s241 = sand.u32 %s46, 1
        %s242 = scalar_lea.sflag [#allocation4], %s241
        %s243 = sand.u32 %s46, 1
        %s244 = smul.addr %s243, 64
        %s245 = scalar_lea.vmem [#allocation3], %s244
        %p246 = pneg %p59
        %p247 = pneg %p56
        %p248 = pneg %p80
        %p249 = pneg %p77
        %p250 = pneg %p101
        %p251 = pneg %p98
        %p252 = pneg %p122
        %p253 = pneg %p119
        %p254 = pneg %p143
        %p255 = pneg %p140
        %p256 = pneg %p171
        %p257 = pneg %p168
        %s258 = sand.u32 %s158, 1
        %s259 = scalar_lea.sflag [#allocation5], %s258
        %s260 = sand.u32 %s158, 1
        %s261 = smul.addr %s260, 64
        %s262 = scalar_lea.vmem [#allocation6], %s261
        %s263 = smul.u32 2, %s29
        %s264 = smul.u32 2, %s29
        %v265 = vld [vmem:[%s236] sm:$0xff]
        %v266 = vld [vmem:[%s236 + $0x8] sm:$0xff]
        %v267 = vld [vmem:[%s236 + $0x10] sm:$0xff]
        %v268 = vld [vmem:[%s236 + $0x18] sm:$0xff]
        %v269 = vld [vmem:[%s236 + $0x20] sm:$0xff]
        %v270 = vld [vmem:[%s236 + $0x28] sm:$0xff]
        %v271 = vld [vmem:[%s236 + $0x30] sm:$0xff]
        %v272 = vld [vmem:[%s236 + $0x38] sm:$0xff]
        %v273 = vld [vmem:[%s1] sm:$0xf]
        %v274 = vld [vmem:[%s2] sm:$0xf]
        %276 = vset.pattern.permute.xlu0 0
        %277 = vperm.xlu0 %276, %v274
        %v278 = vpop.permute.xlu0 %277
        %vm280 = vcmask 261120
        %v282 = vsel %vm280, %v273, 0
        %284 = vmatprep.subr.mxu0 %v266
        %285 = vmatpush1.msra.mxu0 %v265
        %286 = vmatprep.subr.mxu0 %v268
        %287 = vmatpush1.msra.mxu0 %v267
        %288 = vmatprep.subr.mxu0 %v270
        %289 = vmatpush1.msra.mxu0 %v269
        %290 = vmatprep.subr.mxu0 %v272
        %291 = vmatpush1.msra.mxu0 %v271
        %292 = vmatprep.subr.mxu0 0.0
        %293 = vmatpush1.msra.mxu0 0.0
        %294 = vmatprep.subr.mxu0 0.0
        %295 = vmatpush1.msra.mxu0 0.0
        %296 = vmatprep.subr.mxu0 0.0
        %297 = vmatpush1.msra.mxu0 0.0
        %298 = vmatprep.subr.mxu0 0.0
        %299 = vmatpush1.msra.mxu0 0.0
        %300 = vmatprep.subr.mxu0 0.0
        %301 = vmatpush1.msra.mxu0 0.0
        %302 = vmatprep.subr.mxu0 0.0
        %303 = vmatpush1.msra.mxu0 0.0
        %304 = vmatprep.subr.mxu0 0.0
        %305 = vmatpush1.msra.mxu0 0.0
        %306 = vmatprep.subr.mxu0 0.0
        %307 = vmatpush1.msra.mxu0 0.0
        %308 = vmatprep.subr.mxu0 0.0
        %309 = vmatpush1.msra.mxu0 0.0
        %310 = vmatprep.subr.mxu0 0.0
        %311 = vmatpush1.msra.mxu0 0.0
        %312 = vmatprep.subr.mxu0 0.0
        %313 = vmatpush1.msra.mxu0 0.0
        %314 = vmatprep.subr.mxu0 0.0
        %315 = vmatpush1.msra.mxu0 0.0
        %316 = vmatprep.subr.mxu0 0.0
        %317 = vmatpush1.msra.mxu0 0.0
        %318 = vmatprep.subr.mxu0 0.0
        %319 = vmatpush1.msra.mxu0 0.0
        %320 = vmatprep.subr.mxu0 0.0
        %321 = vmatpush1.msra.mxu0 0.0
        %322 = vmatprep.subr.mxu0 0.0
        %323 = vmatpush1.msra.mxu0 0.0
        %324 = vmatprep.subr.mxu0 0.0
        %325 = vmatpush1.msra.mxu0 0.0
        %326 = vmatprep.subr.mxu0 0.0
        %327 = vmatpush1.msra.mxu0 0.0
        %328 = vmatprep.subr.mxu0 0.0
        %329 = vmatpush1.msra.mxu0 0.0
        %330 = vmatprep.subr.mxu0 0.0
        %331 = vmatpush1.msra.mxu0 0.0
        %332 = vmatprep.subr.mxu0 0.0
        %333 = vmatpush1.msra.mxu0 0.0
        %334 = vmatprep.subr.mxu0 0.0
        %335 = vmatpush1.msra.mxu0 0.0
        %336 = vmatprep.subr.mxu0 0.0
        %337 = vmatpush1.msra.mxu0 0.0
        %338 = vmatprep.subr.mxu0 0.0
        %339 = vmatpush1.msra.mxu0 0.0
        %340 = vmatprep.subr.mxu0 0.0
        %341 = vmatpush1.msra.mxu0 0.0
        %342 = vmatprep.subr.mxu0 0.0
        %343 = vmatpush1.msra.mxu0 0.0
        %344 = vmatprep.subr.mxu0 0.0
        %345 = vmatpush1.msra.mxu0 0.0
        %346 = vmatprep.subr.mxu0 0.0
        %347 = vmatpush1.msra.mxu0 0.0
        %348 = vmatprep.mubr.f32.mxu0 0.0
        %349 = vmatmul.mubr.f32.gmra.mrb[0].mxu0 %v282
        %v350 = vpop.f32.mrb[0].mxu0
        %v351 = vadd.f32 %v278, %v350
        %v352 = vpop.f32.mrb[0].mxu0
        %v353 = vadd.f32 %v278, %v352
        %354 = vdwg.mxu0
        %v355 = vmax.f32 %v351, 0.0
        %v356 = vmax.f32 %v353, 0.0
        %v357 = vld [vmem:[%s3] sm:$0xf]
        %359 = vset.pattern.permute.xlu0 0
        %360 = vperm.xlu0 %359, %v357
        %v361 = vpop.permute.xlu0 %360
        %v363 = vmul.f32 %v355, %v361
        %v364 = vmul.f32 %v356, %v361
        %vm365 = vcmask 1043456
        %v366 = vsel %vm365, %v363, 0.0
        %v367 = vrot.slane %v366, 4
        %v368 = vadd.f32 %v366, %v367
        %v369 = vrot.slane %v368, 2
        %v370 = vadd.f32 %v368, %v369
        %v371 = vrot.slane %v370, 1
        %v372 = vadd.f32 %v370, %v371
        %v373 = vsel %vm365, %v364, 0.0
        %v374 = vrot.slane %v373, 4
        %v375 = vadd.f32 %v373, %v374
        %v376 = vrot.slane %v375, 2
        %v377 = vadd.f32 %v375, %v376
        %v378 = vrot.slane %v377, 1
        %v379 = vadd.f32 %v377, %v378
        %v380 = vld [vmem:[#allocation2] sm:$0x1]
        %382 = vset.pattern.permute.xlu0 0
        %383 = vperm.xlu0 %382, %v380
        %v384 = vpop.permute.xlu0 %383
        %v386 = vlaneseq
        %v387 = vshrl.u32 %v386, 7
        %v388 = vsub.s32 0, %v387
        %v389 = vrot.slane %v384, %v388
        %v390 = vadd.f32 %v372, %v389
        %v391 = vadd.f32 %v379, %v389
        %v392 = vxor.u32 %v390, 2147483648
        %v393 = vxor.u32 %v391, 2147483648
        %v394 = vmul.f32 %v392, 1.442695
        %v395 = vpow.pop %v394
        %v396 = vmul.f32 %v393, 1.442695
        %v397 = vpow.pop %v396
        %v398 = vadd.f32 %v395, 1.0
        %v399 = vadd.f32 %v397, 1.0
        %v400 = vrcp.pop %v398
        %v401 = vmul.f32 1.0, %v400
        %v402 = vrcp.pop %v399
        %v403 = vmul.f32 1.0, %v402
        %v404 = vmul.f32 %v265, %v401
        %v405 = vmul.f32 %v266, %v403
        %v406 = vmul.f32 %v267, %v401
        %v407 = vmul.f32 %v268, %v403
        %v408 = vmul.f32 %v269, %v401
        %v409 = vmul.f32 %v270, %v403
        %v410 = vmul.f32 %v271, %v401
        %v411 = vmul.f32 %v272, %v403
        %412 = vst [vmem:[%s262] sm:$0xff] %v404
        %413 = vst [vmem:[%s262 + $0x8] sm:$0xff] %v405
        %414 = vst [vmem:[%s262 + $0x10] sm:$0xff] %v406
        %415 = vst [vmem:[%s262 + $0x18] sm:$0xff] %v407
        %416 = vst [vmem:[%s262 + $0x20] sm:$0xff] %v408
        %417 = vst [vmem:[%s262 + $0x28] sm:$0xff] %v409
        %418 = vst [vmem:[%s262 + $0x30] sm:$0xff] %v410
        %419 = vst [vmem:[%s262 + $0x38] sm:$0xff] %v411
        %s420 = sand.u32 %s158, 1
        %s421 = scalar_lea.sflag [#allocation5], %s420
        %s422 = sand.u32 %s158, 1
        %s423 = smul.addr %s422, 64
        %s424 = scalar_lea.vmem [#allocation6], %s423
        // Predicated region
        $region45: #{tpu_custom_call.1} parent=39 // pred_check
          %p425 = pneg %p168
        $region46: #{tpu_custom_call.1} parent=39 // pred_check_branch
          %427 = sbr.rel (%p425) target = $region48
        $region47: #{tpu_custom_call.1} parent=39 // pred_region
          %s428 = smul.u32 2, %s29
          %s430 = ssub.s32 1024, 1024
          %431 = vsyncadd %s421, %s430
          %s432 = smul.addr %s28, 8
          %s433 = sadd.s32 %s428, %s432
          %s434 = smul.addr %s433, 128
          %s435 = scalar_lea.hbm %s5, %s434
          %s436 = sshll.u32 %s424, 4
          %s437 = int_to_ptr.vmem [resolvable:$true] %s436
          %442 = dma.vmem_to_hbm [thread:$0]  %s437, 1024, %s435, %s421, 256, 256, 16
        $region48: #{tpu_custom_call.1} parent=39 // pred_fallthru
          _
      $region40: #{tpu_custom_call.1} parent=5 // pred_fallthru
        _
      %p443 = scmp.le.s32.totalorder 2, %s19
      // Predicated region
      $region49: #{tpu_custom_call.1} parent=5 // pred_check
        %p444 = pneg %p443
      $region50: #{tpu_custom_call.1} parent=5 // pred_check_branch
        %446 = sbr.rel (%p444) target = $region52
      $region51: #{tpu_custom_call.1} parent=5 // pred_region
        %s447 = ssub.s32 %s19, 2
        // Predicated region
        $region53: #{tpu_custom_call.1} parent=51 // pred_check
          %p448 = pneg %p174
        $region54: #{tpu_custom_call.1} parent=51 // pred_check_branch
          %450 = sbr.rel (%p448) target = $region56
        $region55: #{tpu_custom_call.1} parent=51 // pred_region
          %s451 = sand.u32 %s159, 1
          %s452 = scalar_lea.sflag [#allocation5], %s451
          %s453 = sand.u32 %s159, 1
          %s454 = smul.addr %s453, 64
          %s455 = scalar_lea.vmem [#allocation6], %s454
          %456 = dma.done %s452, 1024
        $region56: #{tpu_custom_call.1} parent=51 // pred_fallthru
          _
      $region52: #{tpu_custom_call.1} parent=5 // pred_fallthru
        _
    $region6: #{tpu_custom_call.1} parent=1 // loop_footer
      %s23 = sadd.s32 1, %s19
    $region7: #{tpu_custom_call.1} parent=1 // loop_footer_branch
      %18 = sbr.rel target = $region3
    $region8: #{tpu_custom_call.1} parent=1 // loop_exit
      _
    %457 = vsyncpa [#allocation4], 1
    %s458 = scalar_lea.sflag [#allocation4], 1
    %459 = vsyncpa %s458, 1
    %460 = vsyncpa [#allocation5], 1
    %s461 = scalar_lea.sflag [#allocation5], 1
    %462 = vsyncpa %s461, 1

</llo_original>
